<compile_context>
chip_gen: v5e
topology: v5e:2x2
jax: 0.10.0
libtpu: 0.0.40
codegen_flags: <defaults>
</compile_context>

<pallas_src>
import functools

import jax
import jax.numpy as jnp
from jax import lax
from jax.experimental import pallas as pl
from jax.experimental.pallas import tpu as pltpu

NEG_SLOPE = 0.01  # F.leaky_relu default negative_slope


def _leaky_relu(x):
    # max(x, slope*x): mul+max (2 VALU ops) instead of cmp+mul+select.
    return jnp.maximum(x, NEG_SLOPE * x)


def _round_up(x, m):
    return ((x + m - 1) // m) * m


def _cdiv(a, b):
    return (a + b - 1) // b


def mlp_kernel(x_ref,
               w1_ref, b1_ref,
               w2_ref, b2_ref,
               w3_ref, b3_ref,
               w4_ref, b4_ref,
               o_ref, *, compute_dtype):
    cdt = compute_dtype
    # Cast the streamed x tile in-kernel (VPU slack) so the wrapper does not
    # emit a separate HBM round-trip cast op; no-op when x is already `cdt`.
    x = x_ref[...].astype(cdt)                           # (tb, D)

    # fc1 + leaky_relu  (dropout(p=0.3) == identity in inference)
    h = jnp.dot(x, w1_ref[...], preferred_element_type=jnp.float32) + b1_ref[...]
    h = _leaky_relu(h)                                   # elementwise in f32

    # fc2 + leaky_relu  (dropout(p=0.3) == identity in inference)
    h = jnp.dot(h.astype(cdt), w2_ref[...],
                preferred_element_type=jnp.float32) + b2_ref[...]
    h = _leaky_relu(h)

    # fc3 + leaky_relu
    h = jnp.dot(h.astype(cdt), w3_ref[...],
                preferred_element_type=jnp.float32) + b3_ref[...]
    h = _leaky_relu(h)                                   # (tb, 64), f32

    # fc4 (64 -> 1): contract h's last dim against the w4 row directly so the
    # result is a lane-dense (1, tb) row (dense vst) without materializing an
    # explicit (tb, 64) activation transpose.
    row = lax.dot_general(w4_ref[...], h.astype(cdt),
                          dimension_numbers=(((1,), (1,)), ((), ())),
                          preferred_element_type=jnp.float32)   # (1, tb)
    row = row + b4_ref[0]                                # SMEM scalar bias
    o_ref[...] = row.reshape(o_ref.shape).astype(o_ref.dtype)


def mlp_without_attention(x, params, *, tb=None, compute_dtype=jnp.bfloat16):
    """x: [B, D]. Returns (out [B, 1], None) matching the torch module."""
    (w1, b1), (w2, b2), (w3, b3), (w4, b4) = params
    B, D = x.shape
    out_dtype = x.dtype
    x_itemsize = jnp.dtype(x.dtype).itemsize
    c_itemsize = jnp.dtype(compute_dtype).itemsize

    # ---- row tile & grid selection ------------------------------------------
    B8 = _round_up(B, 8)
    if tb is None:
        # Lane-align big tiles for dense output stores; 8-sublane align tiny ones.
        align = 128 if B8 >= 256 else 8
        # Target 512-1024 rows/tile (amortizes ~0.35us/step overhead), capped so
        # the double-buffered x tile stays within ~24 MiB of VMEM.
        cap = max(align, (((24 << 20) // (2 * D * x_itemsize)) // align) * align)
        target = min(1024, cap)
        # >= 2 (and even) grid steps so the "parallel" axis shards with balanced
        # work across v7x's two TensorCores.
        G = max(2, _cdiv(B8, target))
        G += G % 2
        tb = _round_up(_cdiv(B8, G), align)
    assert tb % 8 == 0, "row tile must be a multiple of the 8-sublane tiling"
    B_pad = _round_up(B, tb)
    G = B_pad // tb

    if B_pad != B:
        x = jnp.pad(x, ((0, B_pad - B), (0, 0)))

    # ---- operand prep --------------------------------------------------------
    # x streams to the kernel in its original dtype (cast happens in-kernel).
    # Tiny grid-invariant weights are cast once wrapper-side; biases stay f32.
    w1c = w1.astype(compute_dtype)
    w2c = w2.astype(compute_dtype)
    w3c = w3.astype(compute_dtype)
    w4r = w4.reshape(1, -1).astype(compute_dtype)             # (1, 64) row
    b1r = b1.reshape(1, -1).astype(jnp.float32)
    b2r = b2.reshape(1, -1).astype(jnp.float32)
    b3r = b3.reshape(1, -1).astype(jnp.float32)
    b4s = b4.reshape(-1).astype(jnp.float32)                  # (1,) SMEM scalar

    w_elems = D * 256 + 256 * 128 + 128 * 64 + 64
    flops = 2 * B_pad * (D * 256 + 256 * 128 + 128 * 64 + 64 * 1)
    bytes_accessed = int(B_pad * D * x_itemsize
                         + w_elems * c_itemsize
                         + (256 + 128 + 64 + 1) * 4
                         + B_pad * jnp.dtype(out_dtype).itemsize)

    # VMEM budget: double-buffered x tile + (conservatively double-buffered)
    # resident weights/biases/output + f32 intermediates. Raise the default
    # scoped limit (16 MiB on v5e, 32 MiB on v6e/v7x) when needed; cap 64 MiB.
    vmem_est = (2 * tb * D * x_itemsize
                + 2 * w_elems * c_itemsize
                + 2 * (256 + 128 + 64 + 1) * 4
                + 2 * tb * jnp.dtype(out_dtype).itemsize
                + 4 * tb * (256 + 256 + 128 + 64))
    vmem_limit = int(min(64 << 20, max(32 << 20, int(1.25 * vmem_est))))

    # TODO(synk): for very large input_dim (>= ~8-16K) add a K-reduction grid
    # axis (or an inner emit_pipeline) for fc1 with an f32 accumulator instead
    # of keeping the whole (D, 256) w1 and (tb, D) x blocks resident in VMEM.

    def full(a):
        # Grid-invariant: same block index every step, so the pipeline fetches
        # it once and keeps it resident in VMEM.
        return pl.BlockSpec(a.shape, lambda i: (0, 0))

    kernel = functools.partial(mlp_kernel, compute_dtype=compute_dtype)

    out3 = pl.pallas_call(
        kernel,
        out_shape=jax.ShapeDtypeStruct((G, 1, tb), out_dtype),
        grid_spec=pltpu.PrefetchScalarGridSpec(
            num_scalar_prefetch=0,
            grid=(G,),
            in_specs=[
                pl.BlockSpec((tb, D), lambda i: (i, 0)),            # x row tile
                full(w1c), full(b1r),
                full(w2c), full(b2r),
                full(w3c), full(b3r),
                full(w4r),
                pl.BlockSpec(memory_space=pltpu.MemorySpace.SMEM),  # b4 scalar
            ],
            out_specs=pl.BlockSpec((1, 1, tb), lambda i: (i, 0, 0)),
        ),
        compiler_params=pltpu.CompilerParams(
            dimension_semantics=("parallel",),
            vmem_limit_bytes=vmem_limit),
        cost_estimate=pl.CostEstimate(
            flops=flops, transcendentals=0, bytes_accessed=bytes_accessed),
    )(x, w1c, b1r, w2c, b2r, w3c, b3r, w4r, b4s)

    out = out3.reshape(B_pad, 1)[:B]
    return out, None


def init_params(key, input_dim):
    """Deterministic parameter init mimicking nn.Linear's U(-1/sqrt(in), 1/sqrt(in))."""
    dims = [(input_dim, 256), (256, 128), (128, 64), (64, 1)]
    params = []
    for (fan_in, fan_out) in dims:
        key, kw, kb = jax.random.split(key, 3)
        bound = 1.0 / jnp.sqrt(fan_in)
        w = jax.random.uniform(kw, (fan_in, fan_out), jnp.float32, -bound, bound)
        b = jax.random.uniform(kb, (fan_out,), jnp.float32, -bound, bound)
        params.append((w, b))
    return params


def _reference(x, params):
    (w1, b1), (w2, b2), (w3, b3), (w4, b4) = params
    h = _leaky_relu(x @ w1 + b1)
    h = _leaky_relu(h @ w2 + b2)
    h = _leaky_relu(h @ w3 + b3)
    return h @ w4 + b4


if __name__ == "__main__":
    key = jax.random.PRNGKey(0)
    key, kx = jax.random.split(key)

    B, D = 16, 32  # small shapes: batch=16, input_dim=32
    x = jax.random.normal(kx, (B, D), jnp.float32)
    params = init_params(key, D)
    ref = _reference(x, params)

    # f32 compute path (bit-faithful to the torch module): tight tolerance.
    out_f32, none_out = mlp_without_attention(x, params, compute_dtype=jnp.float32)
    out_f32 = jax.block_until_ready(out_f32)
    assert out_f32.shape == (B, 1)
    assert none_out is None
    assert jnp.allclose(out_f32, ref, atol=1e-4, rtol=1e-4)

    # bf16 matmul path (perf config for v6e/v7x): f32 accumulation, loose tol.
    out_bf16, _ = mlp_without_attention(x, params, compute_dtype=jnp.bfloat16)
    out_bf16 = jax.block_until_ready(out_bf16)
    assert out_bf16.shape == (B, 1)
    assert jnp.allclose(out_bf16, ref, atol=5e-2, rtol=5e-2)

    print("KERNEL_OK")
</pallas_src>

<mosaic_0001>
module attributes {stable_mosaic.version = 11 : i64} {
  func.func @mlp_kernel(%arg0: i32, %arg1: memref<8x32xf32, #tpu.memory_space<vmem>>, %arg2: memref<32x256xf32, #tpu.memory_space<vmem>>, %arg3: memref<1x256xf32, #tpu.memory_space<vmem>>, %arg4: memref<256x128xf32, #tpu.memory_space<vmem>>, %arg5: memref<1x128xf32, #tpu.memory_space<vmem>>, %arg6: memref<128x64xf32, #tpu.memory_space<vmem>>, %arg7: memref<1x64xf32, #tpu.memory_space<vmem>>, %arg8: memref<1x64xf32, #tpu.memory_space<vmem>>, %arg9: memref<1xf32, #tpu.memory_space<smem>>, %arg10: memref<1x1x8xf32, #tpu.memory_space<vmem>>) attributes {dimension_semantics = [#tpu.dimension_semantics<parallel>], iteration_bounds = array<i64: 2>, scalar_prefetch = 0 : i64, scratch_operands = 0 : i64, tpu.core_type = #tpu.core_type<tc>, window_params = [{transform_indices = @transform_0, window_bounds = array<i64: 8, 32>}, {pipeline_mode = #tpu.pipeline_mode<synchronous>, transform_indices = @transform_1, window_bounds = array<i64: 32, 256>}, {pipeline_mode = #tpu.pipeline_mode<synchronous>, transform_indices = @transform_2, window_bounds = array<i64: 1, 256>}, {pipeline_mode = #tpu.pipeline_mode<synchronous>, transform_indices = @transform_3, window_bounds = array<i64: 256, 128>}, {pipeline_mode = #tpu.pipeline_mode<synchronous>, transform_indices = @transform_4, window_bounds = array<i64: 1, 128>}, {pipeline_mode = #tpu.pipeline_mode<synchronous>, transform_indices = @transform_5, window_bounds = array<i64: 128, 64>}, {pipeline_mode = #tpu.pipeline_mode<synchronous>, transform_indices = @transform_6, window_bounds = array<i64: 1, 64>}, {pipeline_mode = #tpu.pipeline_mode<synchronous>, transform_indices = @transform_7, window_bounds = array<i64: 1, 64>}, {transform_indices = @transform_8, window_bounds = array<i64: 1>}, {transform_indices = @transform_9, window_bounds = array<i64: 1, 1, 8>}]} {
    %c0 = arith.constant 0 : index
    %c0_0 = arith.constant 0 : index
    %0 = vector.load %arg1[%c0, %c0_0] : memref<8x32xf32, #tpu.memory_space<vmem>>, vector<8x32xf32>
    %c0_1 = arith.constant 0 : index
    %c0_2 = arith.constant 0 : index
    %1 = vector.load %arg2[%c0_1, %c0_2] : memref<32x256xf32, #tpu.memory_space<vmem>>, vector<32x256xf32>
    %cst = arith.constant dense<0.000000e+00> : vector<8x256xf32>
    %2 = tpu.matmul %0, %1, %cst {dimension_numbers = #tpu.dot_dimension_numbers<[1], [0], [0], [1], [0, 0, 1, 1], [], []>} : vector<8x32xf32>, vector<32x256xf32>, vector<8x256xf32> -> vector<8x256xf32>
    %c0_3 = arith.constant 0 : index
    %c0_4 = arith.constant 0 : index
    %3 = vector.load %arg3[%c0_3, %c0_4] : memref<1x256xf32, #tpu.memory_space<vmem>>, vector<1x256xf32>
    %4 = vector.broadcast %3 : vector<1x256xf32> to vector<8x256xf32>
    %5 = arith.addf %2, %4 : vector<8x256xf32>
    %cst_5 = arith.constant 0.00999999977 : f32
    %6 = vector.broadcast %cst_5 : f32 to vector<8x256xf32>
    %7 = arith.mulf %6, %5 : vector<8x256xf32>
    %8 = arith.maximumf %5, %7 : vector<8x256xf32>
    %c0_6 = arith.constant 0 : index
    %c0_7 = arith.constant 0 : index
    %9 = vector.load %arg4[%c0_6, %c0_7] : memref<256x128xf32, #tpu.memory_space<vmem>>, vector<256x128xf32>
    %cst_8 = arith.constant dense<0.000000e+00> : vector<8x128xf32>
    %10 = tpu.matmul %8, %9, %cst_8 {dimension_numbers = #tpu.dot_dimension_numbers<[1], [0], [0], [1], [0, 0, 1, 1], [], []>} : vector<8x256xf32>, vector<256x128xf32>, vector<8x128xf32> -> vector<8x128xf32>
    %c0_9 = arith.constant 0 : index
    %c0_10 = arith.constant 0 : index
    %11 = vector.load %arg5[%c0_9, %c0_10] : memref<1x128xf32, #tpu.memory_space<vmem>>, vector<1x128xf32>
    %12 = vector.broadcast %11 : vector<1x128xf32> to vector<8x128xf32>
    %13 = arith.addf %10, %12 : vector<8x128xf32>
    %cst_11 = arith.constant 0.00999999977 : f32
    %14 = vector.broadcast %cst_11 : f32 to vector<8x128xf32>
    %15 = arith.mulf %14, %13 : vector<8x128xf32>
    %16 = arith.maximumf %13, %15 : vector<8x128xf32>
    %c0_12 = arith.constant 0 : index
    %c0_13 = arith.constant 0 : index
    %17 = vector.load %arg6[%c0_12, %c0_13] : memref<128x64xf32, #tpu.memory_space<vmem>>, vector<128x64xf32>
    %cst_14 = arith.constant dense<0.000000e+00> : vector<8x64xf32>
    %18 = tpu.matmul %16, %17, %cst_14 {dimension_numbers = #tpu.dot_dimension_numbers<[1], [0], [0], [1], [0, 0, 1, 1], [], []>} : vector<8x128xf32>, vector<128x64xf32>, vector<8x64xf32> -> vector<8x64xf32>
    %c0_15 = arith.constant 0 : index
    %c0_16 = arith.constant 0 : index
    %19 = vector.load %arg7[%c0_15, %c0_16] : memref<1x64xf32, #tpu.memory_space<vmem>>, vector<1x64xf32>
    %20 = vector.broadcast %19 : vector<1x64xf32> to vector<8x64xf32>
    %21 = arith.addf %18, %20 : vector<8x64xf32>
    %cst_17 = arith.constant 0.00999999977 : f32
    %22 = vector.broadcast %cst_17 : f32 to vector<8x64xf32>
    %23 = arith.mulf %22, %21 : vector<8x64xf32>
    %24 = arith.maximumf %21, %23 : vector<8x64xf32>
    %c0_18 = arith.constant 0 : index
    %c0_19 = arith.constant 0 : index
    %25 = vector.load %arg8[%c0_18, %c0_19] : memref<1x64xf32, #tpu.memory_space<vmem>>, vector<1x64xf32>
    %cst_20 = arith.constant dense<0.000000e+00> : vector<1x8xf32>
    %26 = tpu.matmul %25, %24, %cst_20 {dimension_numbers = #tpu.dot_dimension_numbers<[1], [1], [0], [0], [0, 0, 1, 0], [], []>} : vector<1x64xf32>, vector<8x64xf32>, vector<1x8xf32> -> vector<1x8xf32>
    %c0_21 = arith.constant 0 : index
    %27 = memref.load %arg9[%c0_21] : memref<1xf32, #tpu.memory_space<smem>>
    %28 = vector.broadcast %27 : f32 to vector<1x8xf32>
    %29 = arith.addf %26, %28 : vector<1x8xf32>
    %30 = vector.shape_cast %29 : vector<1x8xf32> to vector<1x1x8xf32>
    %c0_22 = arith.constant 0 : index
    %c0_23 = arith.constant 0 : index
    %c0_24 = arith.constant 0 : index
    %31 = vector.load %arg10[%c0_22, %c0_23, %c0_24] : memref<1x1x8xf32, #tpu.memory_space<vmem>>, vector<1x1x8xf32>
    tpu.vector_store %arg10[%c0_22, %c0_23, %c0_24], %30 {strides = array<i32>} : memref<1x1x8xf32, #tpu.memory_space<vmem>>, vector<1x1x8xf32>,
    return
  }
  func.func @transform_0(%arg0: i32) -> (i32, i32) {
    %c0_i32 = arith.constant 0 : i32
    %c0_i32_0 = arith.constant 0 : i32
    return %arg0, %c0_i32 : i32, i32
  }
  func.func @transform_1(%arg0: i32) -> (i32, i32) {
    %c0_i32 = arith.constant 0 : i32
    %c0_i32_0 = arith.constant 0 : i32
    %c0_i32_1 = arith.constant 0 : i32
    return %c0_i32, %c0_i32_0 : i32, i32
  }
  func.func @transform_2(%arg0: i32) -> (i32, i32) {
    %c0_i32 = arith.constant 0 : i32
    %c0_i32_0 = arith.constant 0 : i32
    %c0_i32_1 = arith.constant 0 : i32
    return %c0_i32, %c0_i32_0 : i32, i32
  }
  func.func @transform_3(%arg0: i32) -> (i32, i32) {
    %c0_i32 = arith.constant 0 : i32
    %c0_i32_0 = arith.constant 0 : i32
    %c0_i32_1 = arith.constant 0 : i32
    return %c0_i32, %c0_i32_0 : i32, i32
  }
  func.func @transform_4(%arg0: i32) -> (i32, i32) {
    %c0_i32 = arith.constant 0 : i32
    %c0_i32_0 = arith.constant 0 : i32
    %c0_i32_1 = arith.constant 0 : i32
    return %c0_i32, %c0_i32_0 : i32, i32
  }
  func.func @transform_5(%arg0: i32) -> (i32, i32) {
    %c0_i32 = arith.constant 0 : i32
    %c0_i32_0 = arith.constant 0 : i32
    %c0_i32_1 = arith.constant 0 : i32
    return %c0_i32, %c0_i32_0 : i32, i32
  }
  func.func @transform_6(%arg0: i32) -> (i32, i32) {
    %c0_i32 = arith.constant 0 : i32
    %c0_i32_0 = arith.constant 0 : i32
    %c0_i32_1 = arith.constant 0 : i32
    return %c0_i32, %c0_i32_0 : i32, i32
  }
  func.func @transform_7(%arg0: i32) -> (i32, i32) {
    %c0_i32 = arith.constant 0 : i32
    %c0_i32_0 = arith.constant 0 : i32
    %c0_i32_1 = arith.constant 0 : i32
    return %c0_i32, %c0_i32_0 : i32, i32
  }
  func.func @transform_8(%arg0: i32) -> i32 {
    %c0_i32 = arith.constant 0 : i32
    %c0_i32_0 = arith.constant 0 : i32
    return %c0_i32 : i32
  }
  func.func @transform_9(%arg0: i32) -> (i32, i32, i32) {
    %c0_i32 = arith.constant 0 : i32
    %c0_i32_0 = arith.constant 0 : i32
    %c0_i32_1 = arith.constant 0 : i32
    return %arg0, %c0_i32, %c0_i32_0 : i32, i32, i32
  }
}

</mosaic_0001>

<llo_original>
// kernel: tpu_custom_call.1
$region0: #{tpu_custom_call.1}
  #allocation0 [shape = 'u32[]', space=smem, size = 0x4, offset = 0x4, fixed_abs, tag = 'smem constant byte address 0x4 - core index']
  #allocation1 [shape = 'u32[72,128]{1,0:T(1,128)}', space=vmem, size = 0x9000, scoped, tag = 'internal scratch']
  #allocation2 [shape = 'f32[1]{0:T(128)S(6)}', space=smem, size = 0x200, scoped, tag = 'scoped memory for tpu_custom_call.1']
  %s0 = inlined_call_operand.vmem [shape: f32[16,32], index: 0, kind: input, shape index: {}]
  %s1 = inlined_call_operand.vmem [shape: f32[32,256], index: 1, kind: input, shape index: {}]
  %s2 = inlined_call_operand.vmem [shape: f32[1,256], index: 2, kind: input, shape index: {}]
  %s3 = inlined_call_operand.hbm [shape: f32[256,128], index: 3, kind: input, shape index: {}]
  %s4 = inlined_call_operand.vmem [shape: f32[1,128], index: 4, kind: input, shape index: {}]
  %s5 = inlined_call_operand.vmem [shape: f32[128,64], index: 5, kind: input, shape index: {}]
  %s6 = inlined_call_operand.vmem [shape: f32[1,64], index: 6, kind: input, shape index: {}]
  %s7 = inlined_call_operand.vmem [shape: f32[1,64], index: 7, kind: input, shape index: {}]
  %s8 = inlined_call_operand.<no memory space> [shape: f32[1], index: 8, kind: input, shape index: {}]
  %s9 = inlined_call_operand.hbm [shape: f32[2,1,8], index: 9, kind: output, shape index: {}]
  %s10 = sld [smem:[#allocation0]]
  $region73: #{tpu_custom_call.1} parent=0
    _
  %s12 = ssub.s32 1, %s10
  %s13 = scalar_select 0, %s12, %s10
  %14 = sst [smem:[#allocation2]] %s8
  $region1: #{tpu_custom_call.1} parent=0
    #allocation3 [shape = 'u8[131072]{0}', space=vmem, size = 0x20000, scoped, tag = 'input window, operand 3, single buffered']
    #allocation4 [shape = 's32[2]{0}', space=sflag, size = 0x8, scoped, tag = 'scoped memory for tpu_custom_call.1']
    #allocation5 [shape = 's32[2]{0}', space=sflag, size = 0x8, scoped, tag = 'scoped memory for tpu_custom_call.1']
    #allocation6 [shape = 'u8[1024]{0}', space=vmem, size = 0x400, scoped, tag = 'output window, operand 0']
    %15 = vsyncpa [#allocation4], 0
    %16 = vsyncpa [#allocation5], 0
    %s17 = scalar_lea.sflag [#allocation5], 1
    %18 = vsyncpa %s17, 0
    loop: start=0, step=1, limit=4
    $region2: #{tpu_custom_call.1} parent=1 // loop_pre_header
      _
    $region3: #{tpu_custom_call.1} parent=1 // loop_header
      %s20 = sphi 0, %s24
      %p21 = scmp.ge.s32.totalorder %s20, 4
      %s30 = sphi 0, %s32
      %s33 = sphi 0, %s30
      %s34 = sphi 0, %s33
      %s50 = sphi 0, %s34
      %s54 = sphi 0, %s54
      %s56 = sphi 0, %s54
      %s57 = sphi 0, %s56
      %s71 = sphi 0, %s57
      %s75 = sphi 0, %s75
      %s77 = sphi 0, %s75
      %s78 = sphi 0, %s77
      %s92 = sphi 0, %s78
      %s96 = sphi 0, %s96
      %s98 = sphi 0, %s96
      %s99 = sphi 0, %s98
      %s113 = sphi 0, %s99
      %s117 = sphi 0, %s117
      %s119 = sphi 0, %s117
      %s120 = sphi 0, %s119
      %s134 = sphi 0, %s120
      %s138 = sphi 0, %s138
      %s140 = sphi 0, %s138
      %s141 = sphi 0, %s140
      %s155 = sphi 0, %s141
      %s159 = sphi 0, %s159
      %s161 = sphi 0, %s159
      %s162 = sphi 0, %s161
      %s176 = sphi 0, %s162
      %s180 = sphi 0, %s180
      %s182 = sphi 0, %s180
      %s183 = sphi 0, %s182
      %s197 = sphi 0, %s183
      %s201 = sphi 0, %s201
      %s203 = sphi 0, %s201
      %s204 = sphi 0, %s203
      %s218 = sphi 0, %s204
      %s224 = sphi 0, %s226
      %s227 = sphi 0, %s224
      %s228 = sphi 0, %s227
      %s244 = sphi 0, %s228
    $region4: #{tpu_custom_call.1} parent=1 // loop_header_branch
      %23 = sbr.rel (%p21) target = $region8
    $region5: #{tpu_custom_call.1} parent=1 // loop_body
      %s25 = ssub.s32 %s20, 1
      %s26 = ssub.s32 %s20, 2
      %s27 = sadd.s32 %s20, 1
      %s28 = ssub.s32 %s20, %s27
      %p29 = scmp.eq.s32.totalorder %s28, 0
      %s31 = sadd.s32 %s30, 1
      %s32 = scalar_select %p29, %s30, %s31
      %p35 = pneg %p29
      %p36 = scmp.eq.s32.totalorder %s20, 1
      %p37 = por %p35, %p36
      %p38 = scmp.ne.s32.totalorder %s30, %s33
      %p39 = scmp.eq.s32.totalorder %s20, 0
      %p40 = por %p38, %p39
      %p41 = scmp.ne.s32.totalorder %s30, %s33
      %p42 = scmp.eq.s32.totalorder %s25, 1
      %p43 = por %p41, %p42
      %p44 = scmp.ne.s32.totalorder %s33, %s34
      %p45 = scmp.eq.s32.totalorder %s25, 0
      %p46 = por %p44, %p45
      %p47 = scmp.ne.s32.totalorder %s33, %s34
      %p48 = scmp.eq.s32.totalorder %s26, 1
      %p49 = por %p47, %p48
      %p51 = scmp.ne.s32.totalorder %s34, %s50
      %p52 = scmp.eq.s32.totalorder %s26, 0
      %p53 = por %p51, %p52
      %s55 = sadd.s32 %s54, 1
      %p58 = scmp.eq.s32.totalorder %s20, 1
      %p59 = scmp.ne.s32.totalorder %s54, %s56
      %p60 = scmp.eq.s32.totalorder %s20, 0
      %p61 = por %p59, %p60
      %p62 = scmp.ne.s32.totalorder %s54, %s56
      %p63 = scmp.eq.s32.totalorder %s25, 1
      %p64 = por %p62, %p63
      %p65 = scmp.ne.s32.totalorder %s56, %s57
      %p66 = scmp.eq.s32.totalorder %s25, 0
      %p67 = por %p65, %p66
      %p68 = scmp.ne.s32.totalorder %s56, %s57
      %p69 = scmp.eq.s32.totalorder %s26, 1
      %p70 = por %p68, %p69
      %p72 = scmp.ne.s32.totalorder %s57, %s71
      %p73 = scmp.eq.s32.totalorder %s26, 0
      %p74 = por %p72, %p73
      %s76 = sadd.s32 %s75, 1
      %p79 = scmp.eq.s32.totalorder %s20, 1
      %p80 = scmp.ne.s32.totalorder %s75, %s77
      %p81 = scmp.eq.s32.totalorder %s20, 0
      %p82 = por %p80, %p81
      %p83 = scmp.ne.s32.totalorder %s75, %s77
      %p84 = scmp.eq.s32.totalorder %s25, 1
      %p85 = por %p83, %p84
      %p86 = scmp.ne.s32.totalorder %s77, %s78
      %p87 = scmp.eq.s32.totalorder %s25, 0
      %p88 = por %p86, %p87
      %p89 = scmp.ne.s32.totalorder %s77, %s78
      %p90 = scmp.eq.s32.totalorder %s26, 1
      %p91 = por %p89, %p90
      %p93 = scmp.ne.s32.totalorder %s78, %s92
      %p94 = scmp.eq.s32.totalorder %s26, 0
      %p95 = por %p93, %p94
      %s97 = sadd.s32 %s96, 1
      %p100 = scmp.eq.s32.totalorder %s20, 1
      %p101 = scmp.ne.s32.totalorder %s96, %s98
      %p102 = scmp.eq.s32.totalorder %s20, 0
      %p103 = por %p101, %p102
      %p104 = scmp.ne.s32.totalorder %s96, %s98
      %p105 = scmp.eq.s32.totalorder %s25, 1
      %p106 = por %p104, %p105
      %p107 = scmp.ne.s32.totalorder %s98, %s99
      %p108 = scmp.eq.s32.totalorder %s25, 0
      %p109 = por %p107, %p108
      %p110 = scmp.ne.s32.totalorder %s98, %s99
      %p111 = scmp.eq.s32.totalorder %s26, 1
      %p112 = por %p110, %p111
      %p114 = scmp.ne.s32.totalorder %s99, %s113
      %p115 = scmp.eq.s32.totalorder %s26, 0
      %p116 = por %p114, %p115
      %s118 = sadd.s32 %s117, 1
      %p121 = scmp.eq.s32.totalorder %s20, 1
      %p122 = scmp.ne.s32.totalorder %s117, %s119
      %p123 = scmp.eq.s32.totalorder %s20, 0
      %p124 = por %p122, %p123
      %p125 = scmp.ne.s32.totalorder %s117, %s119
      %p126 = scmp.eq.s32.totalorder %s25, 1
      %p127 = por %p125, %p126
      %p128 = scmp.ne.s32.totalorder %s119, %s120
      %p129 = scmp.eq.s32.totalorder %s25, 0
      %p130 = por %p128, %p129
      %p131 = scmp.ne.s32.totalorder %s119, %s120
      %p132 = scmp.eq.s32.totalorder %s26, 1
      %p133 = por %p131, %p132
      %p135 = scmp.ne.s32.totalorder %s120, %s134
      %p136 = scmp.eq.s32.totalorder %s26, 0
      %p137 = por %p135, %p136
      %s139 = sadd.s32 %s138, 1
      %p142 = scmp.eq.s32.totalorder %s20, 1
      %p143 = scmp.ne.s32.totalorder %s138, %s140
      %p144 = scmp.eq.s32.totalorder %s20, 0
      %p145 = por %p143, %p144
      %p146 = scmp.ne.s32.totalorder %s138, %s140
      %p147 = scmp.eq.s32.totalorder %s25, 1
      %p148 = por %p146, %p147
      %p149 = scmp.ne.s32.totalorder %s140, %s141
      %p150 = scmp.eq.s32.totalorder %s25, 0
      %p151 = por %p149, %p150
      %p152 = scmp.ne.s32.totalorder %s140, %s141
      %p153 = scmp.eq.s32.totalorder %s26, 1
      %p154 = por %p152, %p153
      %p156 = scmp.ne.s32.totalorder %s141, %s155
      %p157 = scmp.eq.s32.totalorder %s26, 0
      %p158 = por %p156, %p157
      %s160 = sadd.s32 %s159, 1
      %p163 = scmp.eq.s32.totalorder %s20, 1
      %p164 = scmp.ne.s32.totalorder %s159, %s161
      %p165 = scmp.eq.s32.totalorder %s20, 0
      %p166 = por %p164, %p165
      %p167 = scmp.ne.s32.totalorder %s159, %s161
      %p168 = scmp.eq.s32.totalorder %s25, 1
      %p169 = por %p167, %p168
      %p170 = scmp.ne.s32.totalorder %s161, %s162
      %p171 = scmp.eq.s32.totalorder %s25, 0
      %p172 = por %p170, %p171
      %p173 = scmp.ne.s32.totalorder %s161, %s162
      %p174 = scmp.eq.s32.totalorder %s26, 1
      %p175 = por %p173, %p174
      %p177 = scmp.ne.s32.totalorder %s162, %s176
      %p178 = scmp.eq.s32.totalorder %s26, 0
      %p179 = por %p177, %p178
      %s181 = sadd.s32 %s180, 1
      %p184 = scmp.eq.s32.totalorder %s20, 1
      %p185 = scmp.ne.s32.totalorder %s180, %s182
      %p186 = scmp.eq.s32.totalorder %s20, 0
      %p187 = por %p185, %p186
      %p188 = scmp.ne.s32.totalorder %s180, %s182
      %p189 = scmp.eq.s32.totalorder %s25, 1
      %p190 = por %p188, %p189
      %p191 = scmp.ne.s32.totalorder %s182, %s183
      %p192 = scmp.eq.s32.totalorder %s25, 0
      %p193 = por %p191, %p192
      %p194 = scmp.ne.s32.totalorder %s182, %s183
      %p195 = scmp.eq.s32.totalorder %s26, 1
      %p196 = por %p194, %p195
      %p198 = scmp.ne.s32.totalorder %s183, %s197
      %p199 = scmp.eq.s32.totalorder %s26, 0
      %p200 = por %p198, %p199
      %s202 = sadd.s32 %s201, 1
      %p205 = scmp.eq.s32.totalorder %s20, 1
      %p206 = scmp.ne.s32.totalorder %s201, %s203
      %p207 = scmp.eq.s32.totalorder %s20, 0
      %p208 = por %p206, %p207
      %p209 = scmp.ne.s32.totalorder %s201, %s203
      %p210 = scmp.eq.s32.totalorder %s25, 1
      %p211 = por %p209, %p210
      %p212 = scmp.ne.s32.totalorder %s203, %s204
      %p213 = scmp.eq.s32.totalorder %s25, 0
      %p214 = por %p212, %p213
      %p215 = scmp.ne.s32.totalorder %s203, %s204
      %p216 = scmp.eq.s32.totalorder %s26, 1
      %p217 = por %p215, %p216
      %p219 = scmp.ne.s32.totalorder %s204, %s218
      %p220 = scmp.eq.s32.totalorder %s26, 0
      %p221 = por %p219, %p220
      %s222 = ssub.s32 %s20, %s27
      %p223 = scmp.eq.s32.totalorder %s222, 0
      %s225 = sadd.s32 %s224, 1
      %s226 = scalar_select %p223, %s224, %s225
      %p229 = pneg %p223
      %p230 = scmp.eq.s32.totalorder %s20, 1
      %p231 = por %p229, %p230
      %p232 = scmp.ne.s32.totalorder %s224, %s227
      %p233 = scmp.eq.s32.totalorder %s20, 0
      %p234 = por %p232, %p233
      %p235 = scmp.ne.s32.totalorder %s224, %s227
      %p236 = scmp.eq.s32.totalorder %s25, 1
      %p237 = por %p235, %p236
      %p238 = scmp.ne.s32.totalorder %s227, %s228
      %p239 = scmp.eq.s32.totalorder %s25, 0
      %p240 = por %p238, %p239
      %p241 = scmp.ne.s32.totalorder %s227, %s228
      %p242 = scmp.eq.s32.totalorder %s26, 1
      %p243 = por %p241, %p242
      %p245 = scmp.ne.s32.totalorder %s228, %s244
      %p246 = scmp.eq.s32.totalorder %s26, 0
      %p247 = por %p245, %p246
      %p248 = scmp.le.s32.totalorder 1, %s20
      %p249 = scmp.lt.s32.totalorder %s20, 3
      %p250 = pnand %p248, %p249
      %p251 = pneg %p250
      // Predicated region
      $region9: #{tpu_custom_call.1} parent=5 // pred_check
        _
      $region10: #{tpu_custom_call.1} parent=5 // pred_check_branch
        %253 = sbr.rel (%p250) target = $region12
      $region11: #{tpu_custom_call.1} parent=5 // pred_region
        %s254 = ssub.s32 %s20, 1
        // Predicated region
        $region13: #{tpu_custom_call.1} parent=11 // pred_check
          %p255 = pneg %p67
        $region14: #{tpu_custom_call.1} parent=11 // pred_check_branch
          %257 = sbr.rel (%p255) target = $region16
        $region15: #{tpu_custom_call.1} parent=11 // pred_region
          _
        $region16: #{tpu_custom_call.1} parent=11 // pred_fallthru
          _
        // Predicated region
        $region17: #{tpu_custom_call.1} parent=11 // pred_check
          %p258 = pneg %p88
        $region18: #{tpu_custom_call.1} parent=11 // pred_check_branch
          %260 = sbr.rel (%p258) target = $region20
        $region19: #{tpu_custom_call.1} parent=11 // pred_region
          _
        $region20: #{tpu_custom_call.1} parent=11 // pred_fallthru
          _
        // Predicated region
        $region21: #{tpu_custom_call.1} parent=11 // pred_check
          %p261 = pneg %p109
        $region22: #{tpu_custom_call.1} parent=11 // pred_check_branch
          %263 = sbr.rel (%p261) target = $region24
        $region23: #{tpu_custom_call.1} parent=11 // pred_region
          %265 = vsyncadd [#allocation4], 0
          %s266 = sshll.u32 %s3, 4
          %s267 = int_to_ptr.hbm [resolvable:$true] %s266
          %s268 = sshll.u32 [#allocation3], 4
          %s269 = int_to_ptr.vmem [resolvable:$true] %s268
          %274 = dma.hbm_to_vmem [thread:$0]  %s267, 4096, %s269, [#allocation4], 128, 128, 8
        $region24: #{tpu_custom_call.1} parent=11 // pred_fallthru
          _
        // Predicated region
        $region25: #{tpu_custom_call.1} parent=11 // pred_check
          %p275 = pneg %p130
        $region26: #{tpu_custom_call.1} parent=11 // pred_check_branch
          %277 = sbr.rel (%p275) target = $region28
        $region27: #{tpu_custom_call.1} parent=11 // pred_region
          _
        $region28: #{tpu_custom_call.1} parent=11 // pred_fallthru
          _
        // Predicated region
        $region29: #{tpu_custom_call.1} parent=11 // pred_check
          %p278 = pneg %p151
        $region30: #{tpu_custom_call.1} parent=11 // pred_check_branch
          %280 = sbr.rel (%p278) target = $region32
        $region31: #{tpu_custom_call.1} parent=11 // pred_region
          _
        $region32: #{tpu_custom_call.1} parent=11 // pred_fallthru
          _
        // Predicated region
        $region33: #{tpu_custom_call.1} parent=11 // pred_check
          %p281 = pneg %p172
        $region34: #{tpu_custom_call.1} parent=11 // pred_check_branch
          %283 = sbr.rel (%p281) target = $region36
        $region35: #{tpu_custom_call.1} parent=11 // pred_region
          _
        $region36: #{tpu_custom_call.1} parent=11 // pred_fallthru
          _
        // Predicated region
        $region37: #{tpu_custom_call.1} parent=11 // pred_check
          %p284 = pneg %p193
        $region38: #{tpu_custom_call.1} parent=11 // pred_check_branch
          %286 = sbr.rel (%p284) target = $region40
        $region39: #{tpu_custom_call.1} parent=11 // pred_region
          _
        $region40: #{tpu_custom_call.1} parent=11 // pred_fallthru
          _
        // Predicated region
        $region41: #{tpu_custom_call.1} parent=11 // pred_check
          %p287 = pneg %p214
        $region42: #{tpu_custom_call.1} parent=11 // pred_check_branch
          %289 = sbr.rel (%p287) target = $region44
        $region43: #{tpu_custom_call.1} parent=11 // pred_region
          _
        $region44: #{tpu_custom_call.1} parent=11 // pred_fallthru
          _
      $region12: #{tpu_custom_call.1} parent=5 // pred_fallthru
        _
      %p290 = scmp.lt.s32.totalorder %s20, 2
      // Predicated region
      $region45: #{tpu_custom_call.1} parent=5 // pred_check
        %p291 = pneg %p290
      $region46: #{tpu_custom_call.1} parent=5 // pred_check_branch
        %293 = sbr.rel (%p291) target = $region48
      $region47: #{tpu_custom_call.1} parent=5 // pred_region
        // Predicated region
        $region49: #{tpu_custom_call.1} parent=47 // pred_check
          %p294 = pneg %p40
        $region50: #{tpu_custom_call.1} parent=47 // pred_check_branch
          %296 = sbr.rel (%p294) target = $region52
        $region51: #{tpu_custom_call.1} parent=47 // pred_region
          %p297 = scmp.lt.s32.totalorder %s20, 1
          %s298 = scalar_select %p297, %s20, 1
          %s299 = smul.addr %s298, 8
          %s300 = scalar_lea.vmem %s0, %s299
        $region52: #{tpu_custom_call.1} parent=47 // pred_fallthru
          _
      $region48: #{tpu_custom_call.1} parent=5 // pred_fallthru
        _
      %p301 = scmp.le.s32.totalorder 1, %s20
      %p302 = scmp.lt.s32.totalorder %s20, 3
      %p303 = pnand %p301, %p302
      %p304 = pneg %p303
      // Predicated region
      $region53: #{tpu_custom_call.1} parent=5 // pred_check
        _
      $region54: #{tpu_custom_call.1} parent=5 // pred_check_branch
        %306 = sbr.rel (%p303) target = $region56
      $region55: #{tpu_custom_call.1} parent=5 // pred_region
        %s307 = ssub.s32 %s20, 1
        // Predicated region
        $region57: #{tpu_custom_call.1} parent=55 // pred_check
          %p308 = pneg %p109
        $region58: #{tpu_custom_call.1} parent=55 // pred_check_branch
          %310 = sbr.rel (%p308) target = $region60
        $region59: #{tpu_custom_call.1} parent=55 // pred_region
          %312 = dma.done [#allocation4], 4096
        $region60: #{tpu_custom_call.1} parent=55 // pred_fallthru
          _
        %p313 = scmp.lt.s32.totalorder %s25, 1
        %s314 = scalar_select %p313, %s25, 1
        %s315 = smul.addr %s314, 8
        %s316 = scalar_lea.vmem %s0, %s315
        %p317 = pneg %p46
        %p318 = pneg %p43
        %p319 = pneg %p67
        %p320 = pneg %p64
        %p321 = pneg %p88
        %p322 = pneg %p85
        %p323 = pneg %p109
        %p324 = pneg %p106
        %p325 = pneg %p130
        %p326 = pneg %p127
        %p327 = pneg %p151
        %p328 = pneg %p148
        %p329 = pneg %p172
        %p330 = pneg %p169
        %p331 = pneg %p193
        %p332 = pneg %p190
        %p333 = pneg %p214
        %p334 = pneg %p211
        %p335 = pneg %p240
        %p336 = pneg %p237
        %s337 = sand.u32 %s227, 1
        %s338 = scalar_lea.sflag [#allocation5], %s337
        %s339 = sand.u32 %s227, 1
        %s340 = scalar_lea.vmem [#allocation6], %s339
        %p341 = scmp.lt.s32.totalorder %s25, 1
        %s342 = scalar_select %p341, %s25, 1
        %s343 = smul.addr %s342, 8
        %s344 = scalar_lea.vmem %s0, %s343
        %v345 = vld [vmem:[%s344] sm:$0xff]
        %v346 = vld [vmem:[%s1] sm:$0xff]
        %v347 = vld [vmem:[%s1 + $0x8] sm:$0xff]
        %v348 = vld [vmem:[%s1 + $0x10] sm:$0xff]
        %v349 = vld [vmem:[%s1 + $0x18] sm:$0xff]
        %v350 = vld [vmem:[%s1 + $0x20] sm:$0xff]
        %v351 = vld [vmem:[%s1 + $0x28] sm:$0xff]
        %v352 = vld [vmem:[%s1 + $0x30] sm:$0xff]
        %v353 = vld [vmem:[%s1 + $0x38] sm:$0xff]
        %v354 = vld [vmem:[%s2] sm:$0x3]
        %v356 = vperm.slane %v354, 0
        %v357 = vperm.slane %v354, 1
        %vm360 = vcmask 261120
        %v362 = vsel %vm360, %v345, 0
        %364 = vmatpush.msra.mxu0 0.0
        %365 = vmatpush.msra.mxu0 0.0
        %366 = vmatpush.msra.mxu0 0.0
        %367 = vmatpush.msra.mxu0 0.0
        %368 = vmatpush.msra.mxu0 0.0
        %369 = vmatpush.msra.mxu0 0.0
        %370 = vmatpush.msra.mxu0 0.0
        %371 = vmatpush.msra.mxu0 0.0
        %372 = vmatpush.msra.mxu0 0.0
        %373 = vmatpush.msra.mxu0 0.0
        %374 = vmatpush.msra.mxu0 0.0
        %375 = vmatpush.msra.mxu0 0.0
        %376 = vmatpush.msra.mxu0 %v352
        %377 = vmatpush.msra.mxu0 %v350
        %378 = vmatpush.msra.mxu0 %v348
        %379 = vmatpush.msra.mxu0 %v346
        %380 = vmatmul.f32.gmra.mxu0 %v362
        %v381 = vpop.f32.mrf.mxu0
        %v382 = vadd.f32 %v356, %v381
        %383 = vdwg.mxu0
        %384 = vmatpush.msra.mxu0 0.0
        %385 = vmatpush.msra.mxu0 0.0
        %386 = vmatpush.msra.mxu0 0.0
        %387 = vmatpush.msra.mxu0 0.0
        %388 = vmatpush.msra.mxu0 0.0
        %389 = vmatpush.msra.mxu0 0.0
        %390 = vmatpush.msra.mxu0 0.0
        %391 = vmatpush.msra.mxu0 0.0
        %392 = vmatpush.msra.mxu0 0.0
        %393 = vmatpush.msra.mxu0 0.0
        %394 = vmatpush.msra.mxu0 0.0
        %395 = vmatpush.msra.mxu0 0.0
        %396 = vmatpush.msra.mxu0 %v353
        %397 = vmatpush.msra.mxu0 %v351
        %398 = vmatpush.msra.mxu0 %v349
        %399 = vmatpush.msra.mxu0 %v347
        %400 = vmatmul.f32.gmra.mxu0 %v362
        %v401 = vpop.f32.mrf.mxu0
        %v402 = vadd.f32 %v357, %v401
        %403 = vdwg.mxu0
        %v404 = vmul.f32 %v382, 0.01
        %v405 = vmul.f32 %v402, 0.01
        %v406 = vmax.f32 %v382, %v404
        %v407 = vmax.f32 %v402, %v405
        %v408 = vld [vmem:[#allocation3] sm:$0xff]
        %v409 = vld [vmem:[#allocation3 + $0x8] sm:$0xff]
        %v410 = vld [vmem:[#allocation3 + $0x10] sm:$0xff]
        %v411 = vld [vmem:[#allocation3 + $0x18] sm:$0xff]
        %v412 = vld [vmem:[#allocation3 + $0x20] sm:$0xff]
        %v413 = vld [vmem:[#allocation3 + $0x28] sm:$0xff]
        %v414 = vld [vmem:[#allocation3 + $0x30] sm:$0xff]
        %v415 = vld [vmem:[#allocation3 + $0x38] sm:$0xff]
        %v416 = vld [vmem:[#allocation3 + $0x40] sm:$0xff]
        %v417 = vld [vmem:[#allocation3 + $0x48] sm:$0xff]
        %v418 = vld [vmem:[#allocation3 + $0x50] sm:$0xff]
        %v419 = vld [vmem:[#allocation3 + $0x58] sm:$0xff]
        %v420 = vld [vmem:[#allocation3 + $0x60] sm:$0xff]
        %v421 = vld [vmem:[#allocation3 + $0x68] sm:$0xff]
        %v422 = vld [vmem:[#allocation3 + $0x70] sm:$0xff]
        %v423 = vld [vmem:[#allocation3 + $0x78] sm:$0xff]
        %v424 = vld [vmem:[#allocation3 + $0x80] sm:$0xff]
        %v425 = vld [vmem:[#allocation3 + $0x88] sm:$0xff]
        %v426 = vld [vmem:[#allocation3 + $0x90] sm:$0xff]
        %v427 = vld [vmem:[#allocation3 + $0x98] sm:$0xff]
        %v428 = vld [vmem:[#allocation3 + $0xa0] sm:$0xff]
        %v429 = vld [vmem:[#allocation3 + $0xa8] sm:$0xff]
        %v430 = vld [vmem:[#allocation3 + $0xb0] sm:$0xff]
        %v431 = vld [vmem:[#allocation3 + $0xb8] sm:$0xff]
        %v432 = vld [vmem:[#allocation3 + $0xc0] sm:$0xff]
        %v433 = vld [vmem:[#allocation3 + $0xc8] sm:$0xff]
        %v434 = vld [vmem:[#allocation3 + $0xd0] sm:$0xff]
        %v435 = vld [vmem:[#allocation3 + $0xd8] sm:$0xff]
        %v436 = vld [vmem:[#allocation3 + $0xe0] sm:$0xff]
        %v437 = vld [vmem:[#allocation3 + $0xe8] sm:$0xff]
        %v438 = vld [vmem:[#allocation3 + $0xf0] sm:$0xff]
        %v439 = vld [vmem:[#allocation3 + $0xf8] sm:$0xff]
        %v440 = vld [vmem:[%s4] sm:$0x1]
        %v442 = vperm.slane %v440, 0
        %444 = vmatpush.msra.mxu0 %v423
        %445 = vmatpush.msra.mxu0 %v422
        %446 = vmatpush.msra.mxu0 %v421
        %447 = vmatpush.msra.mxu0 %v420
        %448 = vmatpush.msra.mxu0 %v419
        %449 = vmatpush.msra.mxu0 %v418
        %450 = vmatpush.msra.mxu0 %v417
        %451 = vmatpush.msra.mxu0 %v416
        %452 = vmatpush.msra.mxu0 %v415
        %453 = vmatpush.msra.mxu0 %v414
        %454 = vmatpush.msra.mxu0 %v413
        %455 = vmatpush.msra.mxu0 %v412
        %456 = vmatpush.msra.mxu0 %v411
        %457 = vmatpush.msra.mxu0 %v410
        %458 = vmatpush.msra.mxu0 %v409
        %459 = vmatpush.msra.mxu0 %v408
        %460 = vmatmul.f32.gmra.mxu0 %v406
        %v461 = vpop.f32.mrf.mxu0
        %v462 = vadd.f32 %v442, %v461
        %463 = vdwg.mxu0
        %464 = vmatpush.msra.mxu0 %v439
        %465 = vmatpush.msra.mxu0 %v438
        %466 = vmatpush.msra.mxu0 %v437
        %467 = vmatpush.msra.mxu0 %v436
        %468 = vmatpush.msra.mxu0 %v435
        %469 = vmatpush.msra.mxu0 %v434
        %470 = vmatpush.msra.mxu0 %v433
        %471 = vmatpush.msra.mxu0 %v432
        %472 = vmatpush.msra.mxu0 %v431
        %473 = vmatpush.msra.mxu0 %v430
        %474 = vmatpush.msra.mxu0 %v429
        %475 = vmatpush.msra.mxu0 %v428
        %476 = vmatpush.msra.mxu0 %v427
        %477 = vmatpush.msra.mxu0 %v426
        %478 = vmatpush.msra.mxu0 %v425
        %479 = vmatpush.msra.mxu0 %v424
        %480 = vmatmul.f32.gmra.mxu0 %v407
        %v481 = vpop.f32.mrf.mxu0
        %v482 = vadd.f32 %v462, %v481
        %483 = vdwg.mxu0
        %v484 = vmul.f32 %v482, 0.01
        %v485 = vmax.f32 %v482, %v484
        %v486 = vld [vmem:[%s5] sm:$0xff]
        %v487 = vld [vmem:[%s5 + $0x8] sm:$0xff]
        %v488 = vld [vmem:[%s5 + $0x10] sm:$0xff]
        %v489 = vld [vmem:[%s5 + $0x18] sm:$0xff]
        %v490 = vld [vmem:[%s5 + $0x20] sm:$0xff]
        %v491 = vld [vmem:[%s5 + $0x28] sm:$0xff]
        %v492 = vld [vmem:[%s5 + $0x30] sm:$0xff]
        %v493 = vld [vmem:[%s5 + $0x38] sm:$0xff]
        %v494 = vld [vmem:[%s5 + $0x40] sm:$0xff]
        %v495 = vld [vmem:[%s5 + $0x48] sm:$0xff]
        %v496 = vld [vmem:[%s5 + $0x50] sm:$0xff]
        %v497 = vld [vmem:[%s5 + $0x58] sm:$0xff]
        %v498 = vld [vmem:[%s5 + $0x60] sm:$0xff]
        %v499 = vld [vmem:[%s5 + $0x68] sm:$0xff]
        %v500 = vld [vmem:[%s5 + $0x70] sm:$0xff]
        %v501 = vld [vmem:[%s5 + $0x78] sm:$0xff]
        %v502 = vld [vmem:[%s6] sm:$0x1]
        %v504 = vperm.slane %v502, 0
        %506 = vmatpush.msra.mxu0 %v501
        %507 = vmatpush.msra.mxu0 %v500
        %508 = vmatpush.msra.mxu0 %v499
        %509 = vmatpush.msra.mxu0 %v498
        %510 = vmatpush.msra.mxu0 %v497
        %511 = vmatpush.msra.mxu0 %v496
        %512 = vmatpush.msra.mxu0 %v495
        %513 = vmatpush.msra.mxu0 %v494
        %514 = vmatpush.msra.mxu0 %v493
        %515 = vmatpush.msra.mxu0 %v492
        %516 = vmatpush.msra.mxu0 %v491
        %517 = vmatpush.msra.mxu0 %v490
        %518 = vmatpush.msra.mxu0 %v489
        %519 = vmatpush.msra.mxu0 %v488
        %520 = vmatpush.msra.mxu0 %v487
        %521 = vmatpush.msra.mxu0 %v486
        %522 = vmatmul.f32.gmra.mxu0 %v485
        %v523 = vpop.f32.mrf.mxu0
        %v524 = vadd.f32 %v504, %v523
        %525 = vdwg.mxu0
        %v526 = vmul.f32 %v524, 0.01
        %v527 = vmax.f32 %v524, %v526
        %v528 = vld [vmem:[%s7] sm:$0x1]
        %s529 = sld [smem:[#allocation2]]
        %v530 = vstv %s529
        %vm531 = vcmask 523264
        %v533 = vsel %vm531, %v528, 0
        %v536 = vsel %vm531, %v527, 0
        %538 = vmatpush.xpose.msra.mxu0 0.0
        %539 = vmatpush.xpose.msra.mxu0 0.0
        %540 = vmatpush.xpose.msra.mxu0 0.0
        %541 = vmatpush.xpose.msra.mxu0 0.0
        %542 = vmatpush.xpose.msra.mxu0 0.0
        %543 = vmatpush.xpose.msra.mxu0 0.0
        %544 = vmatpush.xpose.msra.mxu0 0.0
        %545 = vmatpush.xpose.msra.mxu0 0.0
        %546 = vmatpush.xpose.msra.mxu0 0.0
        %547 = vmatpush.xpose.msra.mxu0 0.0
        %548 = vmatpush.xpose.msra.mxu0 0.0
        %549 = vmatpush.xpose.msra.mxu0 0.0
        %550 = vmatpush.xpose.msra.mxu0 0.0
        %551 = vmatpush.xpose.msra.mxu0 0.0
        %552 = vmatpush.xpose.msra.mxu0 0.0
        %553 = vmatpush.xpose.msra.mxu0 %v536
        %554 = vmatmul.f32.gmra.mxu0 %v533
        %v555 = vpop.f32.mrf.mxu0
        %v556 = vadd.f32 %v530, %v555
        %557 = vdwg.mxu0
        %vm558 = vcmask 57344
        %559 = vst.msk [vmem:[%s340] sm:$0x1] %vm558, %v556
        %s560 = sand.u32 %s227, 1
        %s561 = scalar_lea.sflag [#allocation5], %s560
        %s562 = sand.u32 %s227, 1
        %s563 = scalar_lea.vmem [#allocation6], %s562
        // Predicated region
        $region61: #{tpu_custom_call.1} parent=55 // pred_check
          %p564 = pneg %p237
        $region62: #{tpu_custom_call.1} parent=55 // pred_check_branch
          %566 = sbr.rel (%p564) target = $region64
        $region63: #{tpu_custom_call.1} parent=55 // pred_region
          %568 = vsyncadd %s561, 0
          %s569 = scalar_lea.hbm %s9, %s25
          %s571 = sshll.u32 %s563, 4
          %s572 = int_to_ptr.vmem [resolvable:$true] %s571
          %s573 = sshll.u32 %s569, 4
          %s574 = int_to_ptr.hbm [resolvable:$true] %s573
          %576 = dma.vmem_to_hbm [thread:$0]  %s572, 16, %s574, %s561
        $region64: #{tpu_custom_call.1} parent=55 // pred_fallthru
          _
      $region56: #{tpu_custom_call.1} parent=5 // pred_fallthru
        _
      %p577 = scmp.le.s32.totalorder 2, %s20
      // Predicated region
      $region65: #{tpu_custom_call.1} parent=5 // pred_check
        %p578 = pneg %p577
      $region66: #{tpu_custom_call.1} parent=5 // pred_check_branch
        %580 = sbr.rel (%p578) target = $region68
      $region67: #{tpu_custom_call.1} parent=5 // pred_region
        %s581 = ssub.s32 %s20, 2
        // Predicated region
        $region69: #{tpu_custom_call.1} parent=67 // pred_check
          %p582 = pneg %p243
        $region70: #{tpu_custom_call.1} parent=67 // pred_check_branch
          %584 = sbr.rel (%p582) target = $region72
        $region71: #{tpu_custom_call.1} parent=67 // pred_region
          %s585 = sand.u32 %s228, 1
          %s586 = scalar_lea.sflag [#allocation5], %s585
          %s587 = sand.u32 %s228, 1
          %s588 = scalar_lea.vmem [#allocation6], %s587
          %590 = dma.done %s586, 16
        $region72: #{tpu_custom_call.1} parent=67 // pred_fallthru
          _
      $region68: #{tpu_custom_call.1} parent=5 // pred_fallthru
        _
    $region6: #{tpu_custom_call.1} parent=1 // loop_footer
      %s24 = sadd.s32 1, %s20
    $region7: #{tpu_custom_call.1} parent=1 // loop_footer_branch
      %19 = sbr.rel target = $region3
    $region8: #{tpu_custom_call.1} parent=1 // loop_exit
      _
    %591 = vsyncpa [#allocation4], 1
    %s592 = scalar_lea.sflag [#allocation4], 1
    %593 = vsyncpa %s592, 1
    %594 = vsyncpa [#allocation5], 1
    %s595 = scalar_lea.sflag [#allocation5], 1
    %596 = vsyncpa %s595, 1

</llo_original>
